<compile_context>
chip_gen: v5e
topology: v5e:2x2
jax: 0.10.0
libtpu: 0.0.40
codegen_flags: <defaults>
</compile_context>

<pallas_src>
import jax
import jax.numpy as jnp
from jax.experimental import pallas as pl
from jax.experimental.pallas import tpu as pltpu


def chess_model_kernel(x1_ref, x2_ref, w1a_ref, w1b_ref, b1_ref, w2_ref, b2_ref,
                       out_ref):
    # dense1, split over the two un-concatenated inputs (bf16 MXU, f32 acc).
    x1 = x1_ref[...].astype(jnp.bfloat16)
    x2 = x2_ref[...].astype(jnp.bfloat16)
    h = jnp.dot(x1, w1a_ref[...], preferred_element_type=jnp.float32)
    h = h + jnp.dot(x2, w1b_ref[...], preferred_element_type=jnp.float32)
    h = h + b1_ref[...]                                 # resident (1,256) bias
    # LeakyReLU (PyTorch default negative_slope=0.01) on the f32 accumulator.
    h = jnp.maximum(h, 0.01 * h)
    # output head: (tb,256)bf16 @ (256,8)bf16 -> (tb,8)f32
    y = jnp.dot(h.astype(jnp.bfloat16), w2_ref[...],
                preferred_element_type=jnp.float32)
    out_ref[...] = (y + b2_ref[...]).astype(out_ref.dtype)


def _cdiv(a, b):
    return (a + b - 1) // b


def _round_up(a, m):
    return _cdiv(a, m) * m


def _choose_tile(batch, block_b):
    """Batch tile: multiple of 16 (bf16 sublane pack), balanced so padding
    waste stays small, and >=2 grid steps whenever the batch allows (v7x has
    2 TensorCores per chip)."""
    if batch <= 16:
        return _round_up(max(batch, 1), 16)
    n_tiles = max(2, _cdiv(batch, block_b))
    return min(_round_up(_cdiv(batch, n_tiles), 16), block_b)


def simple_chess_model(x1, x2, w1, b1, w2, b2, *, block_b=2048):
    """x1: (B,64), x2: (B,6); w1: (70,256), b1: (256,)/(1,256); w2: (256,3), b2: (3,)/(1,3)."""
    B, in1 = x1.shape
    in2 = x2.shape[1]
    hid = w1.shape[1]
    n_out = w2.shape[1]
    N_PAD = 8                        # 3 real output cols padded to 8 lanes

    tb = _choose_tile(B, block_b)
    Bp = _round_up(B, tb)

    x1 = x1.astype(jnp.float32)
    x2 = x2.astype(jnp.float32)
    if Bp != B:                      # only pad rows when the tile demands it
        x1 = jnp.pad(x1, ((0, Bp - B), (0, 0)))
        x2 = jnp.pad(x2, ((0, Bp - B), (0, 0)))

    # Weights: one-time tiny casts / pads (resident in VMEM for every tile).
    w1a = w1[:in1, :].astype(jnp.bfloat16)                 # (64, 256)
    w1b = w1[in1:in1 + in2, :].astype(jnp.bfloat16)        # (6, 256)
    b1r = b1.reshape(1, hid).astype(jnp.float32)           # (1, 256)
    w2p = jnp.zeros((hid, N_PAD), jnp.bfloat16)
    w2p = w2p.at[:, :n_out].set(w2.astype(jnp.bfloat16))   # (256, 8)
    b2p = jnp.zeros((1, N_PAD), jnp.float32)
    b2p = b2p.at[:, :n_out].set(b2.reshape(1, -1).astype(jnp.float32))

    grid = (Bp // tb,)
    flops = 2 * Bp * ((in1 + in2) * hid + hid * N_PAD)
    bytes_accessed = (Bp * in1 * 4 + Bp * in2 * 4          # activation reads
                      + (in1 + in2) * hid * 2 + hid * 4    # w1a/w1b + b1
                      + hid * N_PAD * 2 + N_PAD * 4        # w2 + b2
                      + Bp * N_PAD * 4)                    # output writeback

    out = pl.pallas_call(
        chess_model_kernel,
        out_shape=jax.ShapeDtypeStruct((Bp, N_PAD), jnp.float32),
        grid_spec=pltpu.PrefetchScalarGridSpec(
            num_scalar_prefetch=0,
            grid=grid,
            in_specs=[
                pl.BlockSpec((tb, in1), lambda i: (i, 0)),    # x1 tiles
                pl.BlockSpec((tb, in2), lambda i: (i, 0)),    # x2 tiles
                pl.BlockSpec((in1, hid), lambda i: (0, 0)),   # w1[:64]  resident
                pl.BlockSpec((in2, hid), lambda i: (0, 0)),   # w1[64:70] resident
                pl.BlockSpec((1, hid), lambda i: (0, 0)),     # b1        resident
                pl.BlockSpec((hid, N_PAD), lambda i: (0, 0)), # w2        resident
                pl.BlockSpec((1, N_PAD), lambda i: (0, 0)),   # b2        resident
            ],
            out_specs=pl.BlockSpec((tb, N_PAD), lambda i: (i, 0)),
        ),
        compiler_params=pltpu.CompilerParams(
            dimension_semantics=("parallel",)),               # megacore sharding
        cost_estimate=pl.CostEstimate(flops=flops, transcendentals=0,
                                      bytes_accessed=bytes_accessed),
    )(x1, x2, w1a, w1b, b1r, w2p, b2p)

    # Strip batch padding and the 5 zero output lanes.
    return out[:B, :n_out]


def init_params(key):
    # Deterministic synthetic init (PyTorch-style uniform bounds ~ 1/sqrt(fan_in)).
    k1, k2, k3, k4 = jax.random.split(key, 4)
    in_dim, hid, out = 70, 256, 3
    bound1 = 1.0 / jnp.sqrt(in_dim)
    bound2 = 1.0 / jnp.sqrt(hid)
    w1 = jax.random.uniform(k1, (in_dim, hid), jnp.float32, -bound1, bound1)
    b1 = jax.random.uniform(k2, (1, hid), jnp.float32, -bound1, bound1)
    w2 = jax.random.uniform(k3, (hid, out), jnp.float32, -bound2, bound2)
    b2 = jax.random.uniform(k4, (1, out), jnp.float32, -bound2, bound2)
    return w1, b1, w2, b2


def reference(x1, x2, w1, b1, w2, b2):
    x = jnp.concatenate([x1, x2], axis=1)
    h = x @ w1 + b1
    h = jnp.where(h > 0, h, 0.01 * h)
    return h @ w2 + b2


if __name__ == "__main__":
    key = jax.random.PRNGKey(0)
    kx1, kx2, kp = jax.random.split(key, 3)

    B = 8  # small demo batch (kernel tiles/pads any B)
    x1 = jax.random.normal(kx1, (B, 64), jnp.float32)   # board features
    x2 = jax.random.normal(kx2, (B, 6), jnp.float32)    # extra features
    w1, b1, w2, b2 = init_params(kp)

    out = simple_chess_model(x1, x2, w1, b1, w2, b2)
    out = jax.block_until_ready(out)

    ref = reference(x1, x2, w1, b1, w2, b2)
    assert out.shape == (B, 3)
    # bf16 MXU passes with f32 accumulation -> ~1e-2-level agreement vs f32 ref.
    assert jnp.allclose(out, ref, atol=5e-2, rtol=5e-2), "mismatch vs reference"

    print("KERNEL_OK")
</pallas_src>

<mosaic_0001>
module attributes {stable_mosaic.version = 11 : i64} {
  func.func @chess_model_kernel(%arg0: i32, %arg1: memref<16x64xf32, #tpu.memory_space<vmem>>, %arg2: memref<16x6xf32, #tpu.memory_space<vmem>>, %arg3: memref<64x256xbf16, #tpu.memory_space<vmem>>, %arg4: memref<6x256xbf16, #tpu.memory_space<vmem>>, %arg5: memref<1x256xf32, #tpu.memory_space<vmem>>, %arg6: memref<256x8xbf16, #tpu.memory_space<vmem>>, %arg7: memref<1x8xf32, #tpu.memory_space<vmem>>, %arg8: memref<16x8xf32, #tpu.memory_space<vmem>>) attributes {dimension_semantics = [#tpu.dimension_semantics<parallel>], iteration_bounds = array<i64: 1>, scalar_prefetch = 0 : i64, scratch_operands = 0 : i64, tpu.core_type = #tpu.core_type<tc>, window_params = [{transform_indices = @transform_0, window_bounds = array<i64: 16, 64>}, {transform_indices = @transform_1, window_bounds = array<i64: 16, 6>}, {pipeline_mode = #tpu.pipeline_mode<synchronous>, transform_indices = @transform_2, window_bounds = array<i64: 64, 256>}, {pipeline_mode = #tpu.pipeline_mode<synchronous>, transform_indices = @transform_3, window_bounds = array<i64: 6, 256>}, {pipeline_mode = #tpu.pipeline_mode<synchronous>, transform_indices = @transform_4, window_bounds = array<i64: 1, 256>}, {pipeline_mode = #tpu.pipeline_mode<synchronous>, transform_indices = @transform_5, window_bounds = array<i64: 256, 8>}, {pipeline_mode = #tpu.pipeline_mode<synchronous>, transform_indices = @transform_6, window_bounds = array<i64: 1, 8>}, {transform_indices = @transform_7, window_bounds = array<i64: 16, 8>}]} {
    %c0 = arith.constant 0 : index
    %c0_0 = arith.constant 0 : index
    %0 = vector.load %arg1[%c0, %c0_0] : memref<16x64xf32, #tpu.memory_space<vmem>>, vector<16x64xf32>
    %1 = arith.truncf %0 : vector<16x64xf32> to vector<16x64xbf16>
    %c0_1 = arith.constant 0 : index
    %c0_2 = arith.constant 0 : index
    %2 = vector.load %arg2[%c0_1, %c0_2] : memref<16x6xf32, #tpu.memory_space<vmem>>, vector<16x6xf32>
    %3 = arith.truncf %2 : vector<16x6xf32> to vector<16x6xbf16>
    %c0_3 = arith.constant 0 : index
    %c0_4 = arith.constant 0 : index
    %4 = vector.load %arg3[%c0_3, %c0_4] : memref<64x256xbf16, #tpu.memory_space<vmem>>, vector<64x256xbf16>
    %cst = arith.constant dense<0.000000e+00> : vector<16x256xf32>
    %5 = tpu.matmul %1, %4, %cst {dimension_numbers = #tpu.dot_dimension_numbers<[1], [0], [0], [1], [0, 0, 1, 1], [], []>} : vector<16x64xbf16>, vector<64x256xbf16>, vector<16x256xf32> -> vector<16x256xf32>
    %c0_5 = arith.constant 0 : index
    %c0_6 = arith.constant 0 : index
    %6 = vector.load %arg4[%c0_5, %c0_6] : memref<6x256xbf16, #tpu.memory_space<vmem>>, vector<6x256xbf16>
    %cst_7 = arith.constant dense<0.000000e+00> : vector<16x256xf32>
    %7 = tpu.matmul %3, %6, %cst_7 {dimension_numbers = #tpu.dot_dimension_numbers<[1], [0], [0], [1], [0, 0, 1, 1], [], []>} : vector<16x6xbf16>, vector<6x256xbf16>, vector<16x256xf32> -> vector<16x256xf32>
    %8 = arith.addf %5, %7 : vector<16x256xf32>
    %c0_8 = arith.constant 0 : index
    %c0_9 = arith.constant 0 : index
    %9 = vector.load %arg5[%c0_8, %c0_9] : memref<1x256xf32, #tpu.memory_space<vmem>>, vector<1x256xf32>
    %10 = vector.broadcast %9 : vector<1x256xf32> to vector<16x256xf32>
    %11 = arith.addf %8, %10 : vector<16x256xf32>
    %cst_10 = arith.constant 0.00999999977 : f32
    %12 = vector.broadcast %cst_10 : f32 to vector<16x256xf32>
    %13 = arith.mulf %12, %11 : vector<16x256xf32>
    %14 = arith.maximumf %11, %13 : vector<16x256xf32>
    %15 = arith.truncf %14 : vector<16x256xf32> to vector<16x256xbf16>
    %c0_11 = arith.constant 0 : index
    %c0_12 = arith.constant 0 : index
    %16 = vector.load %arg6[%c0_11, %c0_12] : memref<256x8xbf16, #tpu.memory_space<vmem>>, vector<256x8xbf16>
    %cst_13 = arith.constant dense<0.000000e+00> : vector<16x8xf32>
    %17 = tpu.matmul %15, %16, %cst_13 {dimension_numbers = #tpu.dot_dimension_numbers<[1], [0], [0], [1], [0, 0, 1, 1], [], []>} : vector<16x256xbf16>, vector<256x8xbf16>, vector<16x8xf32> -> vector<16x8xf32>
    %c0_14 = arith.constant 0 : index
    %c0_15 = arith.constant 0 : index
    %18 = vector.load %arg7[%c0_14, %c0_15] : memref<1x8xf32, #tpu.memory_space<vmem>>, vector<1x8xf32>
    %19 = vector.broadcast %18 : vector<1x8xf32> to vector<16x8xf32>
    %20 = arith.addf %17, %19 : vector<16x8xf32>
    %c0_16 = arith.constant 0 : index
    %c0_17 = arith.constant 0 : index
    %21 = vector.load %arg8[%c0_16, %c0_17] : memref<16x8xf32, #tpu.memory_space<vmem>>, vector<16x8xf32>
    tpu.vector_store %arg8[%c0_16, %c0_17], %20 {strides = array<i32>} : memref<16x8xf32, #tpu.memory_space<vmem>>, vector<16x8xf32>,
    return
  }
  func.func @transform_0(%arg0: i32) -> (i32, i32) {
    %c0_i32 = arith.constant 0 : i32
    %c0_i32_0 = arith.constant 0 : i32
    return %arg0, %c0_i32 : i32, i32
  }
  func.func @transform_1(%arg0: i32) -> (i32, i32) {
    %c0_i32 = arith.constant 0 : i32
    %c0_i32_0 = arith.constant 0 : i32
    return %arg0, %c0_i32 : i32, i32
  }
  func.func @transform_2(%arg0: i32) -> (i32, i32) {
    %c0_i32 = arith.constant 0 : i32
    %c0_i32_0 = arith.constant 0 : i32
    %c0_i32_1 = arith.constant 0 : i32
    return %c0_i32, %c0_i32_0 : i32, i32
  }
  func.func @transform_3(%arg0: i32) -> (i32, i32) {
    %c0_i32 = arith.constant 0 : i32
    %c0_i32_0 = arith.constant 0 : i32
    %c0_i32_1 = arith.constant 0 : i32
    return %c0_i32, %c0_i32_0 : i32, i32
  }
  func.func @transform_4(%arg0: i32) -> (i32, i32) {
    %c0_i32 = arith.constant 0 : i32
    %c0_i32_0 = arith.constant 0 : i32
    %c0_i32_1 = arith.constant 0 : i32
    return %c0_i32, %c0_i32_0 : i32, i32
  }
  func.func @transform_5(%arg0: i32) -> (i32, i32) {
    %c0_i32 = arith.constant 0 : i32
    %c0_i32_0 = arith.constant 0 : i32
    %c0_i32_1 = arith.constant 0 : i32
    return %c0_i32, %c0_i32_0 : i32, i32
  }
  func.func @transform_6(%arg0: i32) -> (i32, i32) {
    %c0_i32 = arith.constant 0 : i32
    %c0_i32_0 = arith.constant 0 : i32
    %c0_i32_1 = arith.constant 0 : i32
    return %c0_i32, %c0_i32_0 : i32, i32
  }
  func.func @transform_7(%arg0: i32) -> (i32, i32) {
    %c0_i32 = arith.constant 0 : i32
    %c0_i32_0 = arith.constant 0 : i32
    return %arg0, %c0_i32 : i32, i32
  }
}

</mosaic_0001>

<llo_original>
// kernel: tpu_custom_call.1
$region0: #{tpu_custom_call.1}
  #allocation0 [shape = 'u32[]', space=smem, size = 0x4, offset = 0x4, fixed_abs, tag = 'smem constant byte address 0x4 - core index']
  #allocation1 [shape = 'u32[72,128]{1,0:T(1,128)}', space=vmem, size = 0x9000, scoped, tag = 'internal scratch']
  %s0 = inlined_call_operand.vmem [shape: f32[16,64], index: 0, kind: input, shape index: {}]
  %s1 = inlined_call_operand.vmem [shape: f32[16,6], index: 1, kind: input, shape index: {}]
  %s2 = inlined_call_operand.vmem [shape: bf16[64,256], index: 2, kind: input, shape index: {}]
  %s3 = inlined_call_operand.vmem [shape: bf16[6,256], index: 3, kind: input, shape index: {}]
  %s4 = inlined_call_operand.vmem [shape: f32[1,256], index: 4, kind: input, shape index: {}]
  %s5 = inlined_call_operand.vmem [shape: bf16[256,8], index: 5, kind: input, shape index: {}]
  %s6 = inlined_call_operand.vmem [shape: f32[1,8], index: 6, kind: input, shape index: {}]
  %s7 = inlined_call_operand.vmem [shape: f32[16,8], index: 7, kind: output, shape index: {}]
  %s8 = sld [smem:[#allocation0]]
  $region38: #{tpu_custom_call.1} parent=0
    _
  %s10 = ssub.s32 1, %s8
  %s11 = scalar_select 0, %s10, %s8
  // Predicated region
  $region2: #{tpu_custom_call.1} parent=0 // pred_check
    _
  $region3: #{tpu_custom_call.1} parent=0 // pred_check_branch
    %13 = sbr.rel (0) target = $region5
  $region4: #{tpu_custom_call.1} parent=0 // pred_region
    _
  $region5: #{tpu_custom_call.1} parent=0 // pred_fallthru
    _
  // Predicated region
  $region6: #{tpu_custom_call.1} parent=0 // pred_check
    _
  $region7: #{tpu_custom_call.1} parent=0 // pred_check_branch
    %15 = sbr.rel (0) target = $region9
  $region8: #{tpu_custom_call.1} parent=0 // pred_region
    _
  $region9: #{tpu_custom_call.1} parent=0 // pred_fallthru
    _
  // Predicated region
  $region10: #{tpu_custom_call.1} parent=0 // pred_check
    _
  $region11: #{tpu_custom_call.1} parent=0 // pred_check_branch
    %17 = sbr.rel (0) target = $region13
  $region12: #{tpu_custom_call.1} parent=0 // pred_region
    _
  $region13: #{tpu_custom_call.1} parent=0 // pred_fallthru
    _
  // Predicated region
  $region14: #{tpu_custom_call.1} parent=0 // pred_check
    _
  $region15: #{tpu_custom_call.1} parent=0 // pred_check_branch
    %19 = sbr.rel (0) target = $region17
  $region16: #{tpu_custom_call.1} parent=0 // pred_region
    _
  $region17: #{tpu_custom_call.1} parent=0 // pred_fallthru
    _
  // Predicated region
  $region18: #{tpu_custom_call.1} parent=0 // pred_check
    _
  $region19: #{tpu_custom_call.1} parent=0 // pred_check_branch
    %21 = sbr.rel (0) target = $region21
  $region20: #{tpu_custom_call.1} parent=0 // pred_region
    _
  $region21: #{tpu_custom_call.1} parent=0 // pred_fallthru
    _
  // Predicated region
  $region22: #{tpu_custom_call.1} parent=0 // pred_check
    _
  $region23: #{tpu_custom_call.1} parent=0 // pred_check_branch
    %23 = sbr.rel (0) target = $region25
  $region24: #{tpu_custom_call.1} parent=0 // pred_region
    _
  $region25: #{tpu_custom_call.1} parent=0 // pred_fallthru
    _
  // Predicated region
  $region26: #{tpu_custom_call.1} parent=0 // pred_check
    _
  $region27: #{tpu_custom_call.1} parent=0 // pred_check_branch
    %25 = sbr.rel (0) target = $region29
  $region28: #{tpu_custom_call.1} parent=0 // pred_region
    _
  $region29: #{tpu_custom_call.1} parent=0 // pred_fallthru
    _
  %v27 = vld [vmem:[%s0] sm:$0xff]
  %v28 = vld [vmem:[%s0 + $0x8] sm:$0xff]
  %v29 = vpack.c.bf16 %v28, %v27
  %v30 = vld [vmem:[%s1] sm:$0xff]
  %v31 = vld [vmem:[%s1 + $0x8] sm:$0xff]
  %v32 = vpack.c.bf16 %v31, %v30
  %v33 = vld [vmem:[%s2] sm:$0xff]
  %v34 = vld [vmem:[%s2 + $0x8] sm:$0xff]
  %v35 = vld [vmem:[%s2 + $0x10] sm:$0xff]
  %v36 = vld [vmem:[%s2 + $0x18] sm:$0xff]
  %v37 = vld [vmem:[%s2 + $0x20] sm:$0xff]
  %v38 = vld [vmem:[%s2 + $0x28] sm:$0xff]
  %v39 = vld [vmem:[%s2 + $0x30] sm:$0xff]
  %v40 = vld [vmem:[%s2 + $0x38] sm:$0xff]
  %v41 = vld [vmem:[%s3] sm:$0x77]
  %v43 = vunpack.c.l.b16 %v41
  %v44 = vunpack.c.h.b16 %v41
  %v45 = vpack.c.b16 %v43, %v43
  %v46 = vpack.c.b16 %v44, %v44
  %vm47 = vcmask 48128
  %v49 = vsel %vm47, %v32, 0
  %vm51 = vcmask 1042432
  %v53 = vsel %vm51, %v45, 0
  %v56 = vsel %vm51, %v46, 0
  %58 = vmatpush.bf16.msra.mxu0 0
  %59 = vmatpush.bf16.msra.mxu0 0
  %60 = vmatpush.bf16.msra.mxu0 0
  %61 = vmatpush.bf16.msra.mxu0 0
  %62 = vmatpush.bf16.msra.mxu0 0
  %63 = vmatpush.bf16.msra.mxu0 0
  %64 = vmatpush.bf16.msra.mxu0 0
  %65 = vmatpush.bf16.msra.mxu0 %v53
  %66 = vmatmul.bf16.gmra.mxu0 %v49
  %v67 = vpop.f32.mrf.mxu0
  %v68 = vadd.f32 0.0, %v67
  %v69 = vpop.f32.mrf.mxu0
  %v70 = vadd.f32 0.0, %v69
  %71 = vdwg.mxu0
  %72 = vmatpush.bf16.msra.mxu0 0
  %73 = vmatpush.bf16.msra.mxu0 0
  %74 = vmatpush.bf16.msra.mxu0 0
  %75 = vmatpush.bf16.msra.mxu0 0
  %76 = vmatpush.bf16.msra.mxu0 0
  %77 = vmatpush.bf16.msra.mxu0 0
  %78 = vmatpush.bf16.msra.mxu0 0
  %79 = vmatpush.bf16.msra.mxu0 %v56
  %80 = vmatmul.bf16.gmra.mxu0 %v49
  %v81 = vpop.f32.mrf.mxu0
  %v82 = vadd.f32 0.0, %v81
  %v83 = vpop.f32.mrf.mxu0
  %v84 = vadd.f32 0.0, %v83
  %85 = vdwg.mxu0
  %v94 = vunpack.c.l.b16 %v33
  %v95 = vunpack.c.h.b16 %v33
  %v96 = vunpack.c.l.b16 %v34
  %v97 = vunpack.c.h.b16 %v34
  %v98 = vunpack.c.l.b16 %v35
  %v99 = vunpack.c.h.b16 %v35
  %v100 = vunpack.c.l.b16 %v36
  %v101 = vunpack.c.h.b16 %v36
  %v102 = vunpack.c.l.b16 %v37
  %v103 = vunpack.c.h.b16 %v37
  %v104 = vunpack.c.l.b16 %v38
  %v105 = vunpack.c.h.b16 %v38
  %v106 = vunpack.c.l.b16 %v39
  %v107 = vunpack.c.h.b16 %v39
  %v108 = vunpack.c.l.b16 %v40
  %v109 = vunpack.c.h.b16 %v40
  %v110 = vpack.c.b16 %v96, %v94
  %v111 = vpack.c.b16 %v97, %v95
  %v112 = vpack.c.b16 %v100, %v98
  %v113 = vpack.c.b16 %v101, %v99
  %v114 = vpack.c.b16 %v104, %v102
  %v115 = vpack.c.b16 %v105, %v103
  %v116 = vpack.c.b16 %v108, %v106
  %v117 = vpack.c.b16 %v109, %v107
  %vm126 = vcmask 523264
  %v128 = vsel %vm126, %v29, 0
  %130 = vmatpush.bf16.msra.mxu0 0
  %131 = vmatpush.bf16.msra.mxu0 0
  %132 = vmatpush.bf16.msra.mxu0 0
  %133 = vmatpush.bf16.msra.mxu0 0
  %134 = vmatpush.bf16.msra.mxu0 %v116
  %135 = vmatpush.bf16.msra.mxu0 %v114
  %136 = vmatpush.bf16.msra.mxu0 %v112
  %137 = vmatpush.bf16.msra.mxu0 %v110
  %138 = vmatmul.bf16.gmra.mxu0 %v128
  %v139 = vpop.f32.mrf.mxu0
  %v140 = vadd.f32 %v68, %v139
  %v141 = vpop.f32.mrf.mxu0
  %v142 = vadd.f32 %v70, %v141
  %143 = vdwg.mxu0
  %144 = vmatpush.bf16.msra.mxu0 0
  %145 = vmatpush.bf16.msra.mxu0 0
  %146 = vmatpush.bf16.msra.mxu0 0
  %147 = vmatpush.bf16.msra.mxu0 0
  %148 = vmatpush.bf16.msra.mxu0 %v117
  %149 = vmatpush.bf16.msra.mxu0 %v115
  %150 = vmatpush.bf16.msra.mxu0 %v113
  %151 = vmatpush.bf16.msra.mxu0 %v111
  %152 = vmatmul.bf16.gmra.mxu0 %v128
  %v153 = vpop.f32.mrf.mxu0
  %v154 = vadd.f32 %v82, %v153
  %v155 = vpop.f32.mrf.mxu0
  %v156 = vadd.f32 %v84, %v155
  %157 = vdwg.mxu0
  %v158 = vld [vmem:[%s4] sm:$0x3]
  %v160 = vperm.slane %v158, 0
  %v161 = vperm.slane %v158, 1
  %v164 = vadd.f32 %v140, %v160
  %v165 = vadd.f32 %v154, %v161
  %v166 = vadd.f32 %v142, %v160
  %v167 = vadd.f32 %v156, %v161
  %v168 = vmul.f32 %v164, 0.01
  %v169 = vmul.f32 %v165, 0.01
  %v170 = vmul.f32 %v166, 0.01
  %v171 = vmul.f32 %v167, 0.01
  %v172 = vmax.f32 %v164, %v168
  %v173 = vmax.f32 %v165, %v169
  %v174 = vmax.f32 %v166, %v170
  %v175 = vmax.f32 %v167, %v171
  %v176 = vpack.c.bf16 %v174, %v172
  %v177 = vpack.c.bf16 %v175, %v173
  %v178 = vld [vmem:[%s5] sm:$0xf]
  %v179 = vld [vmem:[%s5 + $0x4] sm:$0xf]
  %v180 = vld [vmem:[%s5 + $0x8] sm:$0xf]
  %v181 = vld [vmem:[%s5 + $0xc] sm:$0xf]
  %v182 = vld [vmem:[%s5 + $0x10] sm:$0xf]
  %v183 = vld [vmem:[%s5 + $0x14] sm:$0xf]
  %v184 = vld [vmem:[%s5 + $0x18] sm:$0xf]
  %v185 = vld [vmem:[%s5 + $0x1c] sm:$0xf]
  %v186 = vld [vmem:[%s5 + $0x20] sm:$0xf]
  %v187 = vld [vmem:[%s5 + $0x24] sm:$0xf]
  %v188 = vld [vmem:[%s5 + $0x28] sm:$0xf]
  %v189 = vld [vmem:[%s5 + $0x2c] sm:$0xf]
  %v190 = vld [vmem:[%s5 + $0x30] sm:$0xf]
  %v191 = vld [vmem:[%s5 + $0x34] sm:$0xf]
  %v192 = vld [vmem:[%s5 + $0x38] sm:$0xf]
  %v193 = vld [vmem:[%s5 + $0x3c] sm:$0xf]
  %v194 = vld [vmem:[%s5 + $0x40] sm:$0xf]
  %v195 = vld [vmem:[%s5 + $0x44] sm:$0xf]
  %v196 = vld [vmem:[%s5 + $0x48] sm:$0xf]
  %v197 = vld [vmem:[%s5 + $0x4c] sm:$0xf]
  %v198 = vld [vmem:[%s5 + $0x50] sm:$0xf]
  %v199 = vld [vmem:[%s5 + $0x54] sm:$0xf]
  %v200 = vld [vmem:[%s5 + $0x58] sm:$0xf]
  %v201 = vld [vmem:[%s5 + $0x5c] sm:$0xf]
  %v202 = vld [vmem:[%s5 + $0x60] sm:$0xf]
  %v203 = vld [vmem:[%s5 + $0x64] sm:$0xf]
  %v204 = vld [vmem:[%s5 + $0x68] sm:$0xf]
  %v205 = vld [vmem:[%s5 + $0x6c] sm:$0xf]
  %v206 = vld [vmem:[%s5 + $0x70] sm:$0xf]
  %v207 = vld [vmem:[%s5 + $0x74] sm:$0xf]
  %v208 = vld [vmem:[%s5 + $0x78] sm:$0xf]
  %v209 = vld [vmem:[%s5 + $0x7c] sm:$0xf]
  %v210 = vld [vmem:[%s6] sm:$0x1]
  %v212 = vperm.slane %v210, 0
  %v246 = vunpack.c.l.b16 %v178
  %v247 = vunpack.c.l.b16 %v179
  %v248 = vunpack.c.l.b16 %v180
  %v249 = vunpack.c.l.b16 %v181
  %v250 = vunpack.c.l.b16 %v182
  %v251 = vunpack.c.l.b16 %v183
  %v252 = vunpack.c.l.b16 %v184
  %v253 = vunpack.c.l.b16 %v185
  %v254 = vunpack.c.l.b16 %v186
  %v255 = vunpack.c.l.b16 %v187
  %v256 = vunpack.c.l.b16 %v188
  %v257 = vunpack.c.l.b16 %v189
  %v258 = vunpack.c.l.b16 %v190
  %v259 = vunpack.c.l.b16 %v191
  %v260 = vunpack.c.l.b16 %v192
  %v261 = vunpack.c.l.b16 %v193
  %v262 = vunpack.c.l.b16 %v194
  %v263 = vunpack.c.l.b16 %v195
  %v264 = vunpack.c.l.b16 %v196
  %v265 = vunpack.c.l.b16 %v197
  %v266 = vunpack.c.l.b16 %v198
  %v267 = vunpack.c.l.b16 %v199
  %v268 = vunpack.c.l.b16 %v200
  %v269 = vunpack.c.l.b16 %v201
  %v270 = vunpack.c.l.b16 %v202
  %v271 = vunpack.c.l.b16 %v203
  %v272 = vunpack.c.l.b16 %v204
  %v273 = vunpack.c.l.b16 %v205
  %v274 = vunpack.c.l.b16 %v206
  %v275 = vunpack.c.l.b16 %v207
  %v276 = vunpack.c.l.b16 %v208
  %v277 = vunpack.c.l.b16 %v209
  %v278 = vpack.c.b16 %v247, %v246
  %v279 = vpack.c.b16 %v249, %v248
  %v280 = vpack.c.b16 %v251, %v250
  %v281 = vpack.c.b16 %v253, %v252
  %v282 = vpack.c.b16 %v255, %v254
  %v283 = vpack.c.b16 %v257, %v256
  %v284 = vpack.c.b16 %v259, %v258
  %v285 = vpack.c.b16 %v261, %v260
  %v286 = vpack.c.b16 %v263, %v262
  %v287 = vpack.c.b16 %v265, %v264
  %v288 = vpack.c.b16 %v267, %v266
  %v289 = vpack.c.b16 %v269, %v268
  %v290 = vpack.c.b16 %v271, %v270
  %v291 = vpack.c.b16 %v273, %v272
  %v292 = vpack.c.b16 %v275, %v274
  %v293 = vpack.c.b16 %v277, %v276
  %310 = vmatpush.bf16.msra.mxu0 %v285
  %311 = vmatpush.bf16.msra.mxu0 %v284
  %312 = vmatpush.bf16.msra.mxu0 %v283
  %313 = vmatpush.bf16.msra.mxu0 %v282
  %314 = vmatpush.bf16.msra.mxu0 %v281
  %315 = vmatpush.bf16.msra.mxu0 %v280
  %316 = vmatpush.bf16.msra.mxu0 %v279
  %317 = vmatpush.bf16.msra.mxu0 %v278
  %318 = vmatmul.bf16.gmra.mxu0 %v176
  %v319 = vpop.f32.mrf.mxu0
  %v320 = vadd.f32 %v212, %v319
  %v321 = vpop.f32.mrf.mxu0
  %v322 = vadd.f32 %v212, %v321
  %323 = vdwg.mxu0
  %324 = vmatpush.bf16.msra.mxu0 %v293
  %325 = vmatpush.bf16.msra.mxu0 %v292
  %326 = vmatpush.bf16.msra.mxu0 %v291
  %327 = vmatpush.bf16.msra.mxu0 %v290
  %328 = vmatpush.bf16.msra.mxu0 %v289
  %329 = vmatpush.bf16.msra.mxu0 %v288
  %330 = vmatpush.bf16.msra.mxu0 %v287
  %331 = vmatpush.bf16.msra.mxu0 %v286
  %332 = vmatmul.bf16.gmra.mxu0 %v177
  %v333 = vpop.f32.mrf.mxu0
  %v334 = vadd.f32 %v320, %v333
  %v335 = vpop.f32.mrf.mxu0
  %v336 = vadd.f32 %v322, %v335
  %337 = vdwg.mxu0
  %vm338 = vcmask 64512
  %339 = vst.msk [vmem:[%s7] sm:$0xff] %vm338, %v334
  %340 = vst.msk [vmem:[%s7 + $0x8] sm:$0xff] %vm338, %v336
  // Predicated region
  $region30: #{tpu_custom_call.1} parent=0 // pred_check
    _
  $region31: #{tpu_custom_call.1} parent=0 // pred_check_branch
    %342 = sbr.rel (0) target = $region33
  $region32: #{tpu_custom_call.1} parent=0 // pred_region
    _
  $region33: #{tpu_custom_call.1} parent=0 // pred_fallthru
    _
  // Predicated region
  $region34: #{tpu_custom_call.1} parent=0 // pred_check
    _
  $region35: #{tpu_custom_call.1} parent=0 // pred_check_branch
    %344 = sbr.rel (0) target = $region37
  $region36: #{tpu_custom_call.1} parent=0 // pred_region
    _
  $region37: #{tpu_custom_call.1} parent=0 // pred_fallthru
    _

</llo_original>
